<compile_context>
chip_gen: v5e
topology: v5e:2x2
jax: 0.10.0
libtpu: 0.0.40
codegen_flags: <defaults>
</compile_context>

<pallas_src>
import functools

import jax
import jax.numpy as jnp
from jax.experimental import pallas as pl
from jax.experimental.pallas import tpu as pltpu


def _distill_kl_kernel(ys_ref, yt_ref, out_ref, *, inv_T, n_rows, block_rows):
    i = pl.program_id(0)
    num_tiles = pl.num_programs(0)

    ys_raw = ys_ref[...]
    yt_raw = yt_ref[...]

    # Row maxes on the raw dtype (bf16 stays packed on (16,128) vregs).  Max is
    # exact, and max(x/T) == max(x)/T for T > 0, so 1/T folds into the shift.
    ys_max = jnp.max(ys_raw, axis=1, keepdims=True)
    yt_max = jnp.max(yt_raw, axis=1, keepdims=True)

    ys_sh = (ys_raw.astype(jnp.float32) - ys_max.astype(jnp.float32)) * inv_T
    yt_sh = (yt_raw.astype(jnp.float32) - yt_max.astype(jnp.float32)) * inv_T

    e_s = jnp.exp(ys_sh)
    e_t = jnp.exp(yt_sh)
    w = e_t * (yt_sh - ys_sh)

    C = ys_sh.shape[1]
    if C % 128 == 0:
        # Lane-axis sums on the idle MXU: dot against a (C,128) ones tile.
        # Every lane of the (rows,128) result holds that row's sum, so no
        # broadcast is needed downstream.  Frees ~3/5 of the XLU work.
        ones = jnp.ones((C, 128), jnp.float32)
        denom_s = jnp.dot(e_s, ones, preferred_element_type=jnp.float32)
        denom_t = jnp.dot(e_t, ones, preferred_element_type=jnp.float32)
        weighted = jnp.dot(w, ones, preferred_element_type=jnp.float32)
    else:
        # Ragged lane count: keep the reductions on the XLU, where Mosaic masks
        # the padded lanes of the full-extent block correctly.
        denom_s = jnp.sum(e_s, axis=1, keepdims=True)
        denom_t = jnp.sum(e_t, axis=1, keepdims=True)
        weighted = jnp.sum(w, axis=1, keepdims=True)

    # sum_c p_t * (log p_t - log p_s)
    #   = weighted / denom_t + log(denom_s) - log(denom_t)
    #   = weighted * r + log(denom_s * r),   r = 1/denom_t   (one log, no divide)
    r = pl.reciprocal(denom_t, approx=False)
    row_kl = weighted * r + jnp.log(denom_s * r)

    def _store(vals):
        tile_sum = jnp.sum(vals, axis=0, keepdims=True)        # (1, L), L in {1,128}
        out_ref[...] = jnp.broadcast_to(tile_sum[None], out_ref.shape)

    if n_rows % block_rows == 0:
        # Evenly divided batch: no masking code generated at all.
        _store(row_kl)
    else:
        last = num_tiles - 1
        valid_last = n_rows % block_rows                        # trace-time int

        @pl.when(i < last)
        def _():
            _store(row_kl)

        @pl.when(i == last)
        def _():
            # Only the final tile has out-of-range rows; mask them here.
            ridx = jax.lax.broadcasted_iota(jnp.int32, row_kl.shape, 0)
            _store(jnp.where(ridx < valid_last, row_kl, 0.0))


def _choose_block_rows(N, C, itemsize, vmem_budget_bytes, target_min_tiles=8):
    # 2 inputs x 2 pipeline buffers at the input dtype + ~10 f32 full-width temps.
    bytes_per_row = 4 * C * itemsize + 10 * C * 4
    auto = int(vmem_budget_bytes // max(bytes_per_row, 1))
    auto = min(max(auto, 16), 4096)
    # Keep >= target_min_tiles grid steps whenever N allows: shards the
    # "parallel" grid axis across v7x's two TensorCores and lets double
    # buffering hide the HBM DMA behind compute on single-TC chips.
    per_tile = -(-N // target_min_tiles)                        # cdiv
    rows = min(auto, max(per_tile, 16))
    rows -= rows % 16          # (8,128) rule + bf16 (16,128) sublane packing
    return max(rows, 16)


def distill_kl(y_s, y_t, T, *, block_rows=None, vmem_budget_bytes=8 * 1024 * 1024):
    """Pallas implementation of DistillKL.forward.

    y_s, y_t: (N, C) logits.  Pass bf16 logits directly if they are bf16
    upstream (the kernel upcasts in-register; HBM traffic is halved).
    """
    assert y_s.shape == y_t.shape and y_s.ndim == 2
    N, C = y_s.shape
    itemsize = max(jnp.dtype(y_s.dtype).itemsize, jnp.dtype(y_t.dtype).itemsize)

    if block_rows is None:
        block_rows = _choose_block_rows(N, C, itemsize, vmem_budget_bytes)
    else:
        block_rows = int(block_rows)
        if block_rows < N and block_rows % 16 != 0:
            # Respect the (8,128)/(16,128) divisibility rule for user tiles.
            block_rows = max(16, block_rows - block_rows % 16)
    if block_rows >= N:
        block_rows = N                 # tiny batch: one full-extent block
    num_tiles = int(pl.cdiv(N, block_rows))

    kernel = functools.partial(
        _distill_kl_kernel, inv_T=1.0 / float(T), n_rows=N, block_rows=block_rows
    )

    mxu_flops = 3 * 2 * N * C * 128 if C % 128 == 0 else 0
    cost = pl.CostEstimate(
        flops=int(12 * N * C + mxu_flops),
        transcendentals=int(2 * N * C + 2 * N),      # exps + per-row recip/log
        bytes_accessed=int(2 * N * C * itemsize + num_tiles * 128 * 4),
    )

    partials = pl.pallas_call(
        kernel,
        out_shape=jax.ShapeDtypeStruct((num_tiles, 1, 128), jnp.float32),
        grid_spec=pltpu.PrefetchScalarGridSpec(
            num_scalar_prefetch=0,
            grid=(num_tiles,),
            in_specs=[
                pl.BlockSpec((block_rows, C), lambda i: (i, 0)),
                pl.BlockSpec((block_rows, C), lambda i: (i, 0)),
            ],
            out_specs=pl.BlockSpec((1, 1, 128), lambda i: (i, 0, 0)),
        ),
        compiler_params=pltpu.CompilerParams(
            dimension_semantics=("parallel",),        # shards across TCs on v7x
            vmem_limit_bytes=32 * 1024 * 1024,        # safe on v5e/v6e/v7x
        ),
        cost_estimate=cost,
    )(y_s, y_t)

    # Final reduction + scaling outside the kernel (combines all tiles / TCs).
    return jnp.sum(partials[:, 0, 0]) * (float(T) ** 2) / N


def _reference_distill_kl(y_s, y_t, T):
    ys = y_s.astype(jnp.float32) / T
    yt = y_t.astype(jnp.float32) / T
    log_p_s = jax.nn.log_softmax(ys, axis=1)
    p_t = jax.nn.softmax(yt, axis=1)
    log_p_t = jax.nn.log_softmax(yt, axis=1)
    kl = jnp.sum(p_t * (log_p_t - log_p_s))
    return kl * (T ** 2) / y_s.shape[0]


if __name__ == "__main__":
    T = 4.0
    key = jax.random.PRNGKey(0)
    k1, k2, k3, k4, k5, k6 = jax.random.split(key, 6)

    # Case 1: tiny batch -> single full-extent block.
    y_s1 = jax.random.normal(k1, (16, 128), dtype=jnp.float32) * 2.0
    y_t1 = jax.random.normal(k2, (16, 128), dtype=jnp.float32) * 2.0
    out1 = jax.block_until_ready(distill_kl(y_s1, y_t1, T))
    ref1 = _reference_distill_kl(y_s1, y_t1, T)
    assert jnp.allclose(out1, ref1, rtol=1e-5, atol=1e-5), (out1, ref1)

    # Case 2: multi-step "parallel" grid with a ragged final tile (40 = 16+16+8).
    y_s2 = jax.random.normal(k3, (40, 128), dtype=jnp.float32) * 2.0
    y_t2 = jax.random.normal(k4, (40, 128), dtype=jnp.float32) * 2.0
    out2 = jax.block_until_ready(distill_kl(y_s2, y_t2, T, block_rows=16))
    ref2 = _reference_distill_kl(y_s2, y_t2, T)
    assert jnp.allclose(out2, ref2, rtol=1e-5, atol=1e-5), (out2, ref2)

    # Case 3: bf16 logits fed directly (kernel upcasts in-register), auto tiling.
    y_s3 = (jax.random.normal(k5, (24, 256), dtype=jnp.float32) * 2.0).astype(jnp.bfloat16)
    y_t3 = (jax.random.normal(k6, (24, 256), dtype=jnp.float32) * 2.0).astype(jnp.bfloat16)
    out3 = jax.block_until_ready(distill_kl(y_s3, y_t3, T))
    ref3 = _reference_distill_kl(y_s3, y_t3, T)
    assert jnp.allclose(out3, ref3, rtol=2e-2, atol=2e-2), (out3, ref3)

    print("KERNEL_OK")
</pallas_src>

<mosaic_0001>
module attributes {stable_mosaic.version = 11 : i64} {
  func.func @_distill_kl_kernel(%arg0: i32, %arg1: memref<16x128xf32, #tpu.memory_space<vmem>>, %arg2: memref<16x128xf32, #tpu.memory_space<vmem>>, %arg3: memref<1x1x128xf32, #tpu.memory_space<vmem>>) attributes {dimension_semantics = [#tpu.dimension_semantics<parallel>], iteration_bounds = array<i64: 1>, scalar_prefetch = 0 : i64, scratch_operands = 0 : i64, tpu.core_type = #tpu.core_type<tc>, window_params = [{transform_indices = @transform_0, window_bounds = array<i64: 16, 128>}, {transform_indices = @transform_1, window_bounds = array<i64: 16, 128>}, {transform_indices = @transform_2, window_bounds = array<i64: 1, 1, 128>}]} {
    %c0 = arith.constant 0 : index
    %c0_0 = arith.constant 0 : index
    %0 = vector.load %arg1[%c0, %c0_0] : memref<16x128xf32, #tpu.memory_space<vmem>>, vector<16x128xf32>
    %c0_1 = arith.constant 0 : index
    %c0_2 = arith.constant 0 : index
    %1 = vector.load %arg2[%c0_1, %c0_2] : memref<16x128xf32, #tpu.memory_space<vmem>>, vector<16x128xf32>
    %cst = arith.constant dense<0xFF800000> : vector<16xf32>
    %2 = vector.multi_reduction <maximumf>, %0, %cst [1] : vector<16x128xf32> to vector<16xf32>
    %3 = vector.shape_cast %2 : vector<16xf32> to vector<16x1xf32>
    %cst_3 = arith.constant dense<0xFF800000> : vector<16xf32>
    %4 = vector.multi_reduction <maximumf>, %1, %cst_3 [1] : vector<16x128xf32> to vector<16xf32>
    %5 = vector.shape_cast %4 : vector<16xf32> to vector<16x1xf32>
    %6 = vector.broadcast %3 : vector<16x1xf32> to vector<16x128xf32>
    %7 = arith.subf %0, %6 : vector<16x128xf32>
    %cst_4 = arith.constant 2.500000e-01 : f32
    %8 = vector.broadcast %cst_4 : f32 to vector<16x128xf32>
    %9 = arith.mulf %7, %8 : vector<16x128xf32>
    %10 = vector.broadcast %5 : vector<16x1xf32> to vector<16x128xf32>
    %11 = arith.subf %1, %10 : vector<16x128xf32>
    %cst_5 = arith.constant 2.500000e-01 : f32
    %12 = vector.broadcast %cst_5 : f32 to vector<16x128xf32>
    %13 = arith.mulf %11, %12 : vector<16x128xf32>
    %14 = math.exp %9 : vector<16x128xf32>
    %15 = math.exp %13 : vector<16x128xf32>
    %16 = arith.subf %13, %9 : vector<16x128xf32>
    %17 = arith.mulf %15, %16 : vector<16x128xf32>
    %cst_6 = arith.constant 1.000000e+00 : f32
    %18 = vector.broadcast %cst_6 : f32 to vector<128x128xf32>
    %cst_7 = arith.constant dense<0.000000e+00> : vector<16x128xf32>
    %19 = tpu.matmul %14, %18, %cst_7 {dimension_numbers = #tpu.dot_dimension_numbers<[1], [0], [0], [1], [0, 0, 1, 1], [], []>} : vector<16x128xf32>, vector<128x128xf32>, vector<16x128xf32> -> vector<16x128xf32>
    %cst_8 = arith.constant dense<0.000000e+00> : vector<16x128xf32>
    %20 = tpu.matmul %15, %18, %cst_8 {dimension_numbers = #tpu.dot_dimension_numbers<[1], [0], [0], [1], [0, 0, 1, 1], [], []>} : vector<16x128xf32>, vector<128x128xf32>, vector<16x128xf32> -> vector<16x128xf32>
    %cst_9 = arith.constant dense<0.000000e+00> : vector<16x128xf32>
    %21 = tpu.matmul %17, %18, %cst_9 {dimension_numbers = #tpu.dot_dimension_numbers<[1], [0], [0], [1], [0, 0, 1, 1], [], []>} : vector<16x128xf32>, vector<128x128xf32>, vector<16x128xf32> -> vector<16x128xf32>
    %22 = tpu.reciprocal %20 : vector<16x128xf32> -> vector<16x128xf32>
    %23 = arith.mulf %21, %22 : vector<16x128xf32>
    %24 = arith.mulf %19, %22 : vector<16x128xf32>
    %25 = math.log %24 : vector<16x128xf32>
    %26 = arith.addf %23, %25 : vector<16x128xf32>
    %cst_10 = arith.constant dense<0.000000e+00> : vector<128xf32>
    %27 = vector.multi_reduction <add>, %26, %cst_10 [0] : vector<16x128xf32> to vector<128xf32>
    %28 = vector.shape_cast %27 : vector<128xf32> to vector<1x128xf32>
    %29 = vector.shape_cast %28 : vector<1x128xf32> to vector<1x1x128xf32>
    %c0_11 = arith.constant 0 : index
    %c0_12 = arith.constant 0 : index
    %c0_13 = arith.constant 0 : index
    %30 = vector.load %arg3[%c0_11, %c0_12, %c0_13] : memref<1x1x128xf32, #tpu.memory_space<vmem>>, vector<1x1x128xf32>
    tpu.vector_store %arg3[%c0_11, %c0_12, %c0_13], %29 {strides = array<i32>} : memref<1x1x128xf32, #tpu.memory_space<vmem>>, vector<1x1x128xf32>,
    return
  }
  func.func @transform_0(%arg0: i32) -> (i32, i32) {
    %c0_i32 = arith.constant 0 : i32
    %c0_i32_0 = arith.constant 0 : i32
    return %arg0, %c0_i32 : i32, i32
  }
  func.func @transform_1(%arg0: i32) -> (i32, i32) {
    %c0_i32 = arith.constant 0 : i32
    %c0_i32_0 = arith.constant 0 : i32
    return %arg0, %c0_i32 : i32, i32
  }
  func.func @transform_2(%arg0: i32) -> (i32, i32, i32) {
    %c0_i32 = arith.constant 0 : i32
    %c0_i32_0 = arith.constant 0 : i32
    %c0_i32_1 = arith.constant 0 : i32
    return %arg0, %c0_i32, %c0_i32_0 : i32, i32, i32
  }
}

</mosaic_0001>

<llo_original>
// kernel: tpu_custom_call.1
$region0: #{tpu_custom_call.1}
  #allocation0 [shape = 'u32[]', space=smem, size = 0x4, offset = 0x4, fixed_abs, tag = 'smem constant byte address 0x4 - core index']
  #allocation1 [shape = 'u32[72,128]{1,0:T(1,128)}', space=vmem, size = 0x9000, scoped, tag = 'internal scratch']
  %s0 = inlined_call_operand.hbm [shape: f32[16,128], index: 0, kind: input, shape index: {}]
  %s1 = inlined_call_operand.hbm [shape: f32[16,128], index: 1, kind: input, shape index: {}]
  %s2 = inlined_call_operand.hbm [shape: f32[1,1,128], index: 2, kind: output, shape index: {}]
  %s3 = sld [smem:[#allocation0]]
  $region26: #{tpu_custom_call.1} parent=0
    _
  %s5 = ssub.s32 1, %s3
  %s6 = scalar_select 0, %s5, %s3
  $region1: #{tpu_custom_call.1} parent=0
    #allocation2 [shape = 'u8[8192]{0}', space=vmem, size = 0x2000, scoped, tag = 'input window, operand 0, single buffered']
    #allocation3 [shape = 's32[1]{0}', space=sflag, size = 0x4, scoped, tag = 'scoped memory for tpu_custom_call.1']
    #allocation4 [shape = 's32[1]{0}', space=sflag, size = 0x4, scoped, tag = 'scoped memory for tpu_custom_call.1']
    #allocation5 [shape = 'u8[8192]{0}', space=vmem, size = 0x2000, scoped, tag = 'input window, operand 1, single buffered']
    #allocation6 [shape = 's32[1]{0}', space=sflag, size = 0x4, scoped, tag = 'scoped memory for tpu_custom_call.1']
    #allocation7 [shape = 'u8[512]{0}', space=vmem, size = 0x400, scoped, tag = 'output window, operand 0, single buffered']
    %7 = vsyncpa [#allocation3], 0
    %8 = vsyncpa [#allocation6], 0
    %9 = vsyncpa [#allocation4], 0
    // Predicated region
    $region2: #{tpu_custom_call.1} parent=1 // pred_check
      _
    $region3: #{tpu_custom_call.1} parent=1 // pred_check_branch
      %11 = sbr.rel (0) target = $region5
    $region4: #{tpu_custom_call.1} parent=1 // pred_region
      %13 = vsyncadd [#allocation3], 0
      %s14 = sshll.u32 %s0, 4
      %s15 = int_to_ptr.hbm [resolvable:$true] %s14
      %s16 = sshll.u32 [#allocation2], 4
      %s17 = int_to_ptr.vmem [resolvable:$true] %s16
      %22 = dma.hbm_to_vmem [thread:$0]  %s15, 256, %s17, [#allocation3], 128, 128, 8
    $region5: #{tpu_custom_call.1} parent=1 // pred_fallthru
      _
    // Predicated region
    $region6: #{tpu_custom_call.1} parent=1 // pred_check
      _
    $region7: #{tpu_custom_call.1} parent=1 // pred_check_branch
      %24 = sbr.rel (0) target = $region9
    $region8: #{tpu_custom_call.1} parent=1 // pred_region
      %26 = vsyncadd [#allocation6], 0
      %s27 = sshll.u32 %s1, 4
      %s28 = int_to_ptr.hbm [resolvable:$true] %s27
      %s29 = sshll.u32 [#allocation5], 4
      %s30 = int_to_ptr.vmem [resolvable:$true] %s29
      %35 = dma.hbm_to_vmem [thread:$0]  %s28, 256, %s30, [#allocation6], 128, 128, 8
    $region9: #{tpu_custom_call.1} parent=1 // pred_fallthru
      _
    // Predicated region
    $region10: #{tpu_custom_call.1} parent=1 // pred_check
      _
    $region11: #{tpu_custom_call.1} parent=1 // pred_check_branch
      %37 = sbr.rel (0) target = $region13
    $region12: #{tpu_custom_call.1} parent=1 // pred_region
      %39 = dma.done [#allocation3], 256
    $region13: #{tpu_custom_call.1} parent=1 // pred_fallthru
      _
    // Predicated region
    $region14: #{tpu_custom_call.1} parent=1 // pred_check
      _
    $region15: #{tpu_custom_call.1} parent=1 // pred_check_branch
      %41 = sbr.rel (0) target = $region17
    $region16: #{tpu_custom_call.1} parent=1 // pred_region
      %43 = dma.done [#allocation6], 256
    $region17: #{tpu_custom_call.1} parent=1 // pred_fallthru
      _
    %v44 = vld [vmem:[#allocation2] sm:$0xff]
    %v45 = vld [vmem:[#allocation2 + $0x8] sm:$0xff]
    %v46 = vld [vmem:[#allocation5] sm:$0xff]
    %v47 = vld [vmem:[#allocation5 + $0x8] sm:$0xff]
    %48 = vmax.xlane.f32.xlu0 %v44
    %v49 = vpop.xlane.xlu0 %48
    %50 = vmax.xlane.f32.xlu0 %v45
    %v51 = vpop.xlane.xlu0 %50
    %52 = vmax.xlane.f32.xlu0 %v46
    %v53 = vpop.xlane.xlu0 %52
    %54 = vmax.xlane.f32.xlu0 %v47
    %v55 = vpop.xlane.xlu0 %54
    %v56 = vsub.f32 %v44, %v49
    %v57 = vsub.f32 %v45, %v51
    %v58 = vmul.f32 %v56, 0.25
    %v59 = vmul.f32 %v57, 0.25
    %v60 = vsub.f32 %v46, %v53
    %v61 = vsub.f32 %v47, %v55
    %v62 = vmul.f32 %v60, 0.25
    %v63 = vmul.f32 %v61, 0.25
    %v64 = vmul.f32 %v58, 1.442695
    %v65 = vpow.pop %v64
    %v66 = vmul.f32 %v59, 1.442695
    %v67 = vpow.pop %v66
    %v68 = vmul.f32 %v62, 1.442695
    %v69 = vpow.pop %v68
    %v70 = vmul.f32 %v63, 1.442695
    %v71 = vpow.pop %v70
    %v72 = vsub.f32 %v62, %v58
    %v73 = vsub.f32 %v63, %v59
    %v74 = vmul.f32 %v69, %v72
    %v75 = vmul.f32 %v71, %v73
    %76 = vmatpush.msra.mxu0 1.0
    %77 = vmatpush.msra.mxu0 1.0
    %78 = vmatpush.msra.mxu0 1.0
    %79 = vmatpush.msra.mxu0 1.0
    %80 = vmatpush.msra.mxu0 1.0
    %81 = vmatpush.msra.mxu0 1.0
    %82 = vmatpush.msra.mxu0 1.0
    %83 = vmatpush.msra.mxu0 1.0
    %84 = vmatpush.msra.mxu0 1.0
    %85 = vmatpush.msra.mxu0 1.0
    %86 = vmatpush.msra.mxu0 1.0
    %87 = vmatpush.msra.mxu0 1.0
    %88 = vmatpush.msra.mxu0 1.0
    %89 = vmatpush.msra.mxu0 1.0
    %90 = vmatpush.msra.mxu0 1.0
    %91 = vmatpush.msra.mxu0 1.0
    %92 = vmatmul.f32.gmra.mxu0 %v65
    %v93 = vpop.f32.mrf.mxu0
    %v94 = vadd.f32 0.0, %v93
    %95 = vmatmul.f32.gmra.mxu0 %v67
    %v96 = vpop.f32.mrf.mxu0
    %v97 = vadd.f32 0.0, %v96
    %98 = vdwg.mxu0
    %99 = vmatpush.msra.mxu0 1.0
    %100 = vmatpush.msra.mxu0 1.0
    %101 = vmatpush.msra.mxu0 1.0
    %102 = vmatpush.msra.mxu0 1.0
    %103 = vmatpush.msra.mxu0 1.0
    %104 = vmatpush.msra.mxu0 1.0
    %105 = vmatpush.msra.mxu0 1.0
    %106 = vmatpush.msra.mxu0 1.0
    %107 = vmatpush.msra.mxu0 1.0
    %108 = vmatpush.msra.mxu0 1.0
    %109 = vmatpush.msra.mxu0 1.0
    %110 = vmatpush.msra.mxu0 1.0
    %111 = vmatpush.msra.mxu0 1.0
    %112 = vmatpush.msra.mxu0 1.0
    %113 = vmatpush.msra.mxu0 1.0
    %114 = vmatpush.msra.mxu0 1.0
    %115 = vmatmul.f32.gmra.mxu0 %v69
    %v116 = vpop.f32.mrf.mxu0
    %v117 = vadd.f32 0.0, %v116
    %118 = vmatmul.f32.gmra.mxu0 %v71
    %v119 = vpop.f32.mrf.mxu0
    %v120 = vadd.f32 0.0, %v119
    %121 = vdwg.mxu0
    %122 = vmatpush.msra.mxu0 1.0
    %123 = vmatpush.msra.mxu0 1.0
    %124 = vmatpush.msra.mxu0 1.0
    %125 = vmatpush.msra.mxu0 1.0
    %126 = vmatpush.msra.mxu0 1.0
    %127 = vmatpush.msra.mxu0 1.0
    %128 = vmatpush.msra.mxu0 1.0
    %129 = vmatpush.msra.mxu0 1.0
    %130 = vmatpush.msra.mxu0 1.0
    %131 = vmatpush.msra.mxu0 1.0
    %132 = vmatpush.msra.mxu0 1.0
    %133 = vmatpush.msra.mxu0 1.0
    %134 = vmatpush.msra.mxu0 1.0
    %135 = vmatpush.msra.mxu0 1.0
    %136 = vmatpush.msra.mxu0 1.0
    %137 = vmatpush.msra.mxu0 1.0
    %138 = vmatmul.f32.gmra.mxu0 %v74
    %v139 = vpop.f32.mrf.mxu0
    %v140 = vadd.f32 0.0, %v139
    %141 = vmatmul.f32.gmra.mxu0 %v75
    %v142 = vpop.f32.mrf.mxu0
    %v143 = vadd.f32 0.0, %v142
    %144 = vdwg.mxu0
    %v145 = vrcp.pop %v117
    %v146 = vmul.f32 %v117, %v145
    %v147 = vsub.f32 1.0, %v146
    %v148 = vmul.f32 %v145, %v147
    %v149 = vadd.f32 %v145, %v148
    %vm150 = vweird.f32 %v117
    %vm151 = vweird.f32 %v145
    %vm152 = vmor %vm150, %vm151
    %v153 = vsel %vm152, %v145, %v149
    %v154 = vand.u32 2147483647, %v117
    %vm155 = vcmp.eq.f32.partialorder %v154, 8.507059e+37
    %v156 = vand.u32 %v117, 2147483648
    %v157 = vor.u32 1.1754944e-38, %v156
    %v158 = vsel %vm155, %v157, %v153
    %v159 = vrcp.pop %v120
    %v160 = vmul.f32 %v120, %v159
    %v161 = vsub.f32 1.0, %v160
    %v162 = vmul.f32 %v159, %v161
    %v163 = vadd.f32 %v159, %v162
    %vm164 = vweird.f32 %v120
    %vm165 = vweird.f32 %v159
    %vm166 = vmor %vm164, %vm165
    %v167 = vsel %vm166, %v159, %v163
    %v168 = vand.u32 2147483647, %v120
    %vm169 = vcmp.eq.f32.partialorder %v168, 8.507059e+37
    %v170 = vand.u32 %v120, 2147483648
    %v171 = vor.u32 1.1754944e-38, %v170
    %v172 = vsel %vm169, %v171, %v167
    %v173 = vmul.f32 %v140, %v158
    %v174 = vmul.f32 %v143, %v172
    %v175 = vmul.f32 %v94, %v158
    %v176 = vmul.f32 %v97, %v172
    %v177 = vlog2.pop %v175
    %v178 = vmul.f32 %v177, 0.6931472
    %v179 = vlog2.pop %v176
    %v180 = vmul.f32 %v179, 0.6931472
    %v181 = vadd.f32 %v173, %v178
    %v182 = vadd.f32 %v174, %v180
    %v183 = vadd.f32 %v181, %v182
    %v184 = vrot.slane %v183, 4
    %v185 = vadd.f32 %v183, %v184
    %v186 = vrot.slane %v185, 2
    %v187 = vadd.f32 %v185, %v186
    %v188 = vrot.slane %v187, 1
    %v189 = vadd.f32 %v187, %v188
    %190 = vst [vmem:[#allocation7] sm:$0x1] %v189
    // Predicated region
    $region18: #{tpu_custom_call.1} parent=1 // pred_check
      _
    $region19: #{tpu_custom_call.1} parent=1 // pred_check_branch
      %192 = sbr.rel (0) target = $region21
    $region20: #{tpu_custom_call.1} parent=1 // pred_region
      %194 = vsyncadd [#allocation4], 0
      %s196 = sshll.u32 [#allocation7], 4
      %s197 = int_to_ptr.vmem [resolvable:$true] %s196
      %s198 = sshll.u32 %s2, 4
      %s199 = int_to_ptr.hbm [resolvable:$true] %s198
      %201 = dma.vmem_to_hbm [thread:$0]  %s197, 16, %s199, [#allocation4]
    $region21: #{tpu_custom_call.1} parent=1 // pred_fallthru
      _
    // Predicated region
    $region22: #{tpu_custom_call.1} parent=1 // pred_check
      _
    $region23: #{tpu_custom_call.1} parent=1 // pred_check_branch
      %203 = sbr.rel (0) target = $region25
    $region24: #{tpu_custom_call.1} parent=1 // pred_region
      %205 = dma.done [#allocation4], 16
    $region25: #{tpu_custom_call.1} parent=1 // pred_fallthru
      _
    %206 = vsyncpa [#allocation3], 1
    %207 = vsyncpa [#allocation6], 1
    %208 = vsyncpa [#allocation4], 1

</llo_original>
